<compile_context>
chip_gen: v7x
topology: tpu7x:2x2x1
jax: 0.10.0
libtpu: 0.0.40
codegen_flags: <defaults>
</compile_context>

<pallas_src>
import functools

import jax
import jax.numpy as jnp
from jax.experimental import pallas as pl
from jax.experimental.pallas import tpu as pltpu

EPS = 1e-5


# ---------------------------------------------------------------------------
# Fused residual-block kernel (built for static N, H, W, Cin, Cout)
# ---------------------------------------------------------------------------
def _make_block_kernel(N, H, W, cin, cout):
    NH = N * H
    WCI = W * cin
    WCO = W * cout
    inv_count = 1.0 / float(N * H * W)

    def kernel(x_ref, m1_ref, b1_ref, m2_ref, b2_ref, bs_ref, pmat_ref, o_ref):
        # x_ref:    (N*H, W*cin)      bf16 lane-fused NHWC activations
        #                             (only W*cin=64 lanes wide here; keep the
        #                              fused last dim >=128 when cin grows)
        # m1_ref:   (W*cin, 4*W*cout) bf16 [circulant dy=-1 | dy=0 | dy=+1 | 1x1 skip]
        # m2_ref:   (W*cout, 3*W*cout) bf16 [circulant dy=-1 | dy=0 | dy=+1]
        # b1/b2/bs: (1, W*cout)       f32 lane-broadcast biases
        # pmat_ref: (W*cout, W*cout)  f32 per-channel fold+broadcast matrix P
        # o_ref:    (N*H, W*cout)     f32 lane-dense output

        # Sublane-index masks for the per-image H wrap rows (computed once).
        row = jax.lax.broadcasted_iota(jnp.int32, (NH, WCO), 0)
        h = row % H
        mask_top = h == 0          # rows whose (h-1) wraps
        mask_bot = h == H - 1      # rows whose (h+1) wraps

        def shift_up(p):           # gather row (h + 1) % H within each image
            return jnp.where(mask_bot,
                             pltpu.roll(p, shift=H - 1, axis=0),
                             pltpu.roll(p, shift=NH - 1, axis=0))

        def shift_down(p):         # gather row (h - 1) % H within each image
            return jnp.where(mask_top,
                             pltpu.roll(p, shift=NH - (H - 1), axis=0),
                             pltpu.roll(p, shift=1, axis=0))

        def batch_norm(y):
            # Training-mode batch stats over (N, H, W); two-pass variance,
            # all statistics in f32.  One (1,WCO)x(WCO,WCO) dot per statistic.
            row_sum = jnp.sum(y, axis=0, keepdims=True)            # (1, WCO)
            mean_l = jnp.dot(row_sum, pmat_ref[...],
                             preferred_element_type=jnp.float32) * inv_count
            d = y - mean_l
            var_l = jnp.dot(jnp.sum(d * d, axis=0, keepdims=True), pmat_ref[...],
                            preferred_element_type=jnp.float32) * inv_count
            return d * jax.lax.rsqrt(var_l + EPS)

        # conv1 + fused 1x1 skip: one bf16 matmul, K=WCI, 4*WCO output lanes.
        p = jnp.dot(x_ref[...], m1_ref[...],
                    preferred_element_type=jnp.float32)            # (NH, 4*WCO)
        y1 = (shift_down(p[:, 0:WCO]) + p[:, WCO:2 * WCO]
              + shift_up(p[:, 2 * WCO:3 * WCO]) + b1_ref[...])
        skip = p[:, 3 * WCO:4 * WCO] + bs_ref[...]

        # BN1 -> ReLU
        a1 = jnp.maximum(batch_norm(y1), 0.0)

        # conv2: one bf16 matmul, K=WCO, 3*WCO output lanes.
        q = jnp.dot(a1.astype(jnp.bfloat16), m2_ref[...],
                    preferred_element_type=jnp.float32)            # (NH, 3*WCO)
        y2 = (shift_down(q[:, 0:WCO]) + q[:, WCO:2 * WCO]
              + shift_up(q[:, 2 * WCO:3 * WCO]) + b2_ref[...])

        # BN2 + residual add
        o_ref[...] = skip + batch_norm(y2)

    return kernel


# ---------------------------------------------------------------------------
# Host-side weight preprocessing (constant-folded under jit)
# ---------------------------------------------------------------------------
def _circulant_conv_weights(w, W):
    """(3, 3, cin, cout) conv weights -> (3, W*cin, W*cout) block-circulant
    matrices.  Matrix t implements the dy = t-1 row of taps with circular W
    wrap:  M_t[w'*cin + ci, w*cout + co] = w[t, dx+1, ci, co], w' = (w+dx)%W.
    """
    kh, kw, cin, cout = w.shape
    eye_w = jnp.eye(W, dtype=jnp.float32)
    mats = []
    for t in range(kh):
        m = jnp.zeros((W * cin, W * cout), jnp.float32)
        for kx in range(kw):
            dx = kx - 1
            shift = jnp.roll(eye_w, dx, axis=0)   # shift[w', w] = [w' == (w+dx)%W]
            m = m + jnp.kron(shift, w[t, kx].astype(jnp.float32))
        mats.append(m)
    return jnp.stack(mats)


# ---------------------------------------------------------------------------
# Public forward pass (NCHW in / NCHW out)
# ---------------------------------------------------------------------------
def e2_res_block_nchw(x_nchw, params):
    N, cin, H, W = x_nchw.shape
    cout = params["b1"].shape[0]
    NH, WCI, WCO = N * H, W * cin, W * cout

    x_nhwc = jnp.transpose(x_nchw, (0, 2, 3, 1)).astype(jnp.float32)
    x_fused = x_nhwc.reshape(NH, WCI).astype(jnp.bfloat16)   # lane-fused layout

    # Host-concatenated circulant weights: conv1 taps + 1x1 skip in one matrix,
    # conv2 taps in another; bf16 operands, f32 in-kernel accumulation.
    m1 = _circulant_conv_weights(params["w1"], W)             # (3, WCI, WCO)
    m2 = _circulant_conv_weights(params["w2"], W)             # (3, WCO, WCO)
    ws = jnp.kron(jnp.eye(W, dtype=jnp.float32),
                  params["ws"].astype(jnp.float32))           # (WCI, WCO)
    m1_cat = jnp.concatenate([m1[0], m1[1], m1[2], ws],
                             axis=1).astype(jnp.bfloat16)     # (WCI, 4*WCO)
    m2_cat = jnp.concatenate([m2[0], m2[1], m2[2]],
                             axis=1).astype(jnp.bfloat16)     # (WCO, 3*WCO)

    b1 = jnp.tile(params["b1"].astype(jnp.float32), W).reshape(1, WCO)
    b2 = jnp.tile(params["b2"].astype(jnp.float32), W).reshape(1, WCO)
    bs = jnp.tile(params["bs"].astype(jnp.float32), W).reshape(1, WCO)

    # BN fold+broadcast fused into one 0/1 matrix: P[w*c+k, w'*c+k'] = [k==k'].
    fold = jnp.kron(jnp.ones((W, 1), jnp.float32),
                    jnp.eye(cout, dtype=jnp.float32))          # (WCO, cout)
    pmat = fold @ fold.T                                       # (WCO, WCO)

    kernel = _make_block_kernel(N, H, W, cin, cout)

    flops = 2 * NH * (WCI * 4 * WCO + WCO * 3 * WCO) + 4 * 2 * WCO * WCO
    bytes_accessed = (NH * WCI * 2 + WCI * 4 * WCO * 2 + WCO * 3 * WCO * 2
                      + 3 * WCO * 4 + WCO * WCO * 4 + NH * WCO * 4)

    out_fused = pl.pallas_call(
        kernel,
        out_shape=jax.ShapeDtypeStruct((NH, WCO), jnp.float32),
        cost_estimate=pl.CostEstimate(flops=flops,
                                      transcendentals=2 * WCO,
                                      bytes_accessed=bytes_accessed),
    )(x_fused, m1_cat, b1, m2_cat, b2, bs, pmat)

    out_nhwc = out_fused.reshape(N, H, W, cout)                # free reshape
    return jnp.transpose(out_nhwc, (0, 3, 1, 2))


# ---------------------------------------------------------------------------
# Pure-JAX reference (for correctness check only)
# ---------------------------------------------------------------------------
def _reference_block_nchw(x_nchw, params):
    x = jnp.transpose(x_nchw, (0, 2, 3, 1)).astype(jnp.float32)

    def conv3x3(a, w, b):
        ap = jnp.pad(a, ((0, 0), (1, 1), (1, 1), (0, 0)), mode="wrap")
        y = jax.lax.conv_general_dilated(
            ap, w, window_strides=(1, 1), padding="VALID",
            dimension_numbers=("NHWC", "HWIO", "NHWC"),
            precision=jax.lax.Precision.HIGHEST)
        return y + b

    def bn(y):
        m = jnp.mean(y, axis=(0, 1, 2), keepdims=True)
        v = jnp.mean(jnp.square(y - m), axis=(0, 1, 2), keepdims=True)
        return (y - m) * jax.lax.rsqrt(v + EPS)

    y1 = conv3x3(x, params["w1"], params["b1"])
    a1 = jnp.maximum(bn(y1), 0.0)
    y2 = conv3x3(a1, params["w2"], params["b2"])
    z = bn(y2)
    skip = jnp.einsum("nhwc,cd->nhwd", x, params["ws"],
                      precision=jax.lax.Precision.HIGHEST) + params["bs"]
    return jnp.transpose(skip + z, (0, 3, 1, 2))


# ---------------------------------------------------------------------------
# Parameter init (synthetic weights; kaiming for >=2D params, as in the spec)
# ---------------------------------------------------------------------------
def init_params(key, cin, cout):
    k1, k2, k3, k4, k5, k6 = jax.random.split(key, 6)

    def kaiming(k, shape, fan_in):
        return jax.random.normal(k, shape, jnp.float32) * jnp.sqrt(2.0 / fan_in)

    return {
        "w1": kaiming(k1, (3, 3, cin, cout), 9 * cin),
        "b1": jax.random.uniform(k2, (cout,), jnp.float32, -0.1, 0.1),
        "w2": kaiming(k3, (3, 3, cout, cout), 9 * cout),
        "b2": jax.random.uniform(k4, (cout,), jnp.float32, -0.1, 0.1),
        "ws": kaiming(k5, (cin, cout), cin),
        "bs": jax.random.uniform(k6, (cout,), jnp.float32, -0.1, 0.1),
    }


if __name__ == "__main__":
    key = jax.random.PRNGKey(0)
    k_x, k_p = jax.random.split(key)

    # One E2ResBlock: 4 trivial input fields -> 8 trivial output fields, 16x16 torus.
    N, cin, cout, H, W = 2, 4, 8, 16, 16
    x = jax.random.normal(k_x, (N, cin, H, W), jnp.float32)
    params = init_params(k_p, cin, cout)

    fwd = jax.jit(functools.partial(e2_res_block_nchw, params=params))
    out = fwd(x)
    jax.block_until_ready(out)

    assert out.shape == (N, cout, H, W), out.shape
    assert bool(jnp.all(jnp.isfinite(out)))

    ref = _reference_block_nchw(x, params)
    max_err = float(jnp.max(jnp.abs(out - ref)))
    # Tolerance sized for bf16 MXU operands (f32 accumulation, f32 BN stats);
    # output scale is O(1.5), any layout/shift bug would be O(1).
    assert max_err < 5e-2, f"mismatch vs reference: max |err| = {max_err}"

    print("KERNEL_OK")
</pallas_src>

<mosaic_0001>
module attributes {stable_mosaic.version = 11 : i64} {
  func.func @kernel(%arg0: memref<32x64xbf16, #tpu.memory_space<vmem>>, %arg1: memref<64x512xbf16, #tpu.memory_space<vmem>>, %arg2: memref<1x128xf32, #tpu.memory_space<vmem>>, %arg3: memref<128x384xbf16, #tpu.memory_space<vmem>>, %arg4: memref<1x128xf32, #tpu.memory_space<vmem>>, %arg5: memref<1x128xf32, #tpu.memory_space<vmem>>, %arg6: memref<128x128xf32, #tpu.memory_space<vmem>>, %arg7: memref<32x128xf32, #tpu.memory_space<vmem>>) attributes {dimension_semantics = [], scalar_prefetch = 0 : i64, scratch_operands = 0 : i64, tpu.core_type = #tpu.core_type<tc>} {
    %0 = tpu.iota {dimensions = array<i32: 0>} : vector<32x128xi32>
    %c16_i32 = arith.constant 16 : i32
    %c0_i32 = arith.constant 0 : i32
    %1 = arith.cmpi eq, %c16_i32, %c0_i32 : i32
    %c1_i32 = arith.constant 1 : i32
    %2 = arith.select %1, %c1_i32, %c16_i32 : i32
    %3 = vector.broadcast %2 : i32 to vector<32x128xi32>
    %4 = arith.remsi %0, %3 : vector<32x128xi32>
    %c0_i32_0 = arith.constant 0 : i32
    %5 = vector.broadcast %c0_i32_0 : i32 to vector<32x128xi32>
    %6 = arith.cmpi ne, %4, %5 : vector<32x128xi32>
    %c0_i32_1 = arith.constant 0 : i32
    %7 = vector.broadcast %c0_i32_1 : i32 to vector<32x128xi32>
    %8 = arith.cmpi slt, %4, %7 : vector<32x128xi32>
    %c0_i32_2 = arith.constant 0 : i32
    %9 = arith.cmpi slt, %2, %c0_i32_2 : i32
    %10 = vector.broadcast %9 : i1 to vector<32x128xi1>
    %11 = vector.broadcast %10 : vector<32x128xi1> to vector<32x128xi1>
    %12 = arith.xori %8, %11 : vector<32x128xi1>
    %13 = arith.andi %12, %6 : vector<32x128xi1>
    %14 = vector.broadcast %2 : i32 to vector<32x128xi32>
    %15 = arith.addi %4, %14 : vector<32x128xi32>
    %16 = arith.select %13, %15, %4 : vector<32x128xi1>, vector<32x128xi32>
    %c0_i32_3 = arith.constant 0 : i32
    %17 = vector.broadcast %c0_i32_3 : i32 to vector<32x128xi32>
    %18 = arith.cmpi eq, %16, %17 : vector<32x128xi32>
    %c15_i32 = arith.constant 15 : i32
    %19 = vector.broadcast %c15_i32 : i32 to vector<32x128xi32>
    %20 = arith.cmpi eq, %16, %19 : vector<32x128xi32>
    %c0 = arith.constant 0 : index
    %c0_4 = arith.constant 0 : index
    %21 = vector.load %arg0[%c0, %c0_4] : memref<32x64xbf16, #tpu.memory_space<vmem>>, vector<32x64xbf16>
    %c0_5 = arith.constant 0 : index
    %c0_6 = arith.constant 0 : index
    %22 = vector.load %arg1[%c0_5, %c0_6] : memref<64x512xbf16, #tpu.memory_space<vmem>>, vector<64x512xbf16>
    %cst = arith.constant dense<0.000000e+00> : vector<32x512xf32>
    %23 = tpu.matmul %21, %22, %cst {dimension_numbers = #tpu.dot_dimension_numbers<[1], [0], [0], [1], [0, 0, 1, 1], [], []>} : vector<32x64xbf16>, vector<64x512xbf16>, vector<32x512xf32> -> vector<32x512xf32>
    %24 = vector.extract_strided_slice %23 {offsets = [0, 0], sizes = [32, 128], strides = [1, 1]} : vector<32x512xf32> to vector<32x128xf32>
    %c17_i32 = arith.constant 17 : i32
    %25 = tpu.dynamic_rotate %24 by %c17_i32 dim 0 : vector<32x128xf32>, i32 -> vector<32x128xf32>
    %c1_i32_7 = arith.constant 1 : i32
    %26 = tpu.dynamic_rotate %24 by %c1_i32_7 dim 0 : vector<32x128xf32>, i32 -> vector<32x128xf32>
    %27 = arith.select %18, %25, %26 : vector<32x128xi1>, vector<32x128xf32>
    %28 = vector.extract_strided_slice %23 {offsets = [0, 128], sizes = [32, 128], strides = [1, 1]} : vector<32x512xf32> to vector<32x128xf32>
    %29 = arith.addf %27, %28 : vector<32x128xf32>
    %30 = vector.extract_strided_slice %23 {offsets = [0, 256], sizes = [32, 128], strides = [1, 1]} : vector<32x512xf32> to vector<32x128xf32>
    %c15_i32_8 = arith.constant 15 : i32
    %31 = tpu.dynamic_rotate %30 by %c15_i32_8 dim 0 : vector<32x128xf32>, i32 -> vector<32x128xf32>
    %c31_i32 = arith.constant 31 : i32
    %32 = tpu.dynamic_rotate %30 by %c31_i32 dim 0 : vector<32x128xf32>, i32 -> vector<32x128xf32>
    %33 = arith.select %20, %31, %32 : vector<32x128xi1>, vector<32x128xf32>
    %34 = arith.addf %29, %33 : vector<32x128xf32>
    %c0_9 = arith.constant 0 : index
    %c0_10 = arith.constant 0 : index
    %35 = vector.load %arg2[%c0_9, %c0_10] : memref<1x128xf32, #tpu.memory_space<vmem>>, vector<1x128xf32>
    %36 = vector.broadcast %35 : vector<1x128xf32> to vector<32x128xf32>
    %37 = arith.addf %34, %36 : vector<32x128xf32>
    %38 = vector.extract_strided_slice %23 {offsets = [0, 384], sizes = [32, 128], strides = [1, 1]} : vector<32x512xf32> to vector<32x128xf32>
    %c0_11 = arith.constant 0 : index
    %c0_12 = arith.constant 0 : index
    %39 = vector.load %arg5[%c0_11, %c0_12] : memref<1x128xf32, #tpu.memory_space<vmem>>, vector<1x128xf32>
    %40 = vector.broadcast %39 : vector<1x128xf32> to vector<32x128xf32>
    %41 = arith.addf %38, %40 : vector<32x128xf32>
    %cst_13 = arith.constant dense<0.000000e+00> : vector<128xf32>
    %42 = vector.multi_reduction <add>, %37, %cst_13 [0] : vector<32x128xf32> to vector<128xf32>
    %43 = vector.shape_cast %42 : vector<128xf32> to vector<1x128xf32>
    %c0_14 = arith.constant 0 : index
    %c0_15 = arith.constant 0 : index
    %44 = vector.load %arg6[%c0_14, %c0_15] : memref<128x128xf32, #tpu.memory_space<vmem>>, vector<128x128xf32>
    %cst_16 = arith.constant dense<0.000000e+00> : vector<1x128xf32>
    %45 = tpu.matmul %43, %44, %cst_16 {dimension_numbers = #tpu.dot_dimension_numbers<[1], [0], [0], [1], [0, 0, 1, 1], [], []>} : vector<1x128xf32>, vector<128x128xf32>, vector<1x128xf32> -> vector<1x128xf32>
    %cst_17 = arith.constant 0.001953125 : f32
    %46 = vector.broadcast %cst_17 : f32 to vector<1x128xf32>
    %47 = arith.mulf %45, %46 : vector<1x128xf32>
    %48 = vector.broadcast %47 : vector<1x128xf32> to vector<32x128xf32>
    %49 = arith.subf %37, %48 : vector<32x128xf32>
    %50 = arith.mulf %49, %49 : vector<32x128xf32>
    %cst_18 = arith.constant dense<0.000000e+00> : vector<128xf32>
    %51 = vector.multi_reduction <add>, %50, %cst_18 [0] : vector<32x128xf32> to vector<128xf32>
    %52 = vector.shape_cast %51 : vector<128xf32> to vector<1x128xf32>
    %c0_19 = arith.constant 0 : index
    %c0_20 = arith.constant 0 : index
    %53 = vector.load %arg6[%c0_19, %c0_20] : memref<128x128xf32, #tpu.memory_space<vmem>>, vector<128x128xf32>
    %cst_21 = arith.constant dense<0.000000e+00> : vector<1x128xf32>
    %54 = tpu.matmul %52, %53, %cst_21 {dimension_numbers = #tpu.dot_dimension_numbers<[1], [0], [0], [1], [0, 0, 1, 1], [], []>} : vector<1x128xf32>, vector<128x128xf32>, vector<1x128xf32> -> vector<1x128xf32>
    %cst_22 = arith.constant 0.001953125 : f32
    %55 = vector.broadcast %cst_22 : f32 to vector<1x128xf32>
    %56 = arith.mulf %54, %55 : vector<1x128xf32>
    %cst_23 = arith.constant 9.99999974E-6 : f32
    %57 = vector.broadcast %cst_23 : f32 to vector<1x128xf32>
    %58 = arith.addf %56, %57 : vector<1x128xf32>
    %59 = math.rsqrt %58 : vector<1x128xf32>
    %60 = vector.broadcast %59 : vector<1x128xf32> to vector<32x128xf32>
    %61 = arith.mulf %49, %60 : vector<32x128xf32>
    %cst_24 = arith.constant 0.000000e+00 : f32
    %62 = vector.broadcast %cst_24 : f32 to vector<32x128xf32>
    %63 = arith.maximumf %61, %62 : vector<32x128xf32>
    %64 = arith.truncf %63 : vector<32x128xf32> to vector<32x128xbf16>
    %c0_25 = arith.constant 0 : index
    %c0_26 = arith.constant 0 : index
    %65 = vector.load %arg3[%c0_25, %c0_26] : memref<128x384xbf16, #tpu.memory_space<vmem>>, vector<128x384xbf16>
    %cst_27 = arith.constant dense<0.000000e+00> : vector<32x384xf32>
    %66 = tpu.matmul %64, %65, %cst_27 {dimension_numbers = #tpu.dot_dimension_numbers<[1], [0], [0], [1], [0, 0, 1, 1], [], []>} : vector<32x128xbf16>, vector<128x384xbf16>, vector<32x384xf32> -> vector<32x384xf32>
    %67 = vector.extract_strided_slice %66 {offsets = [0, 0], sizes = [32, 128], strides = [1, 1]} : vector<32x384xf32> to vector<32x128xf32>
    %c17_i32_28 = arith.constant 17 : i32
    %68 = tpu.dynamic_rotate %67 by %c17_i32_28 dim 0 : vector<32x128xf32>, i32 -> vector<32x128xf32>
    %c1_i32_29 = arith.constant 1 : i32
    %69 = tpu.dynamic_rotate %67 by %c1_i32_29 dim 0 : vector<32x128xf32>, i32 -> vector<32x128xf32>
    %70 = arith.select %18, %68, %69 : vector<32x128xi1>, vector<32x128xf32>
    %71 = vector.extract_strided_slice %66 {offsets = [0, 128], sizes = [32, 128], strides = [1, 1]} : vector<32x384xf32> to vector<32x128xf32>
    %72 = arith.addf %70, %71 : vector<32x128xf32>
    %73 = vector.extract_strided_slice %66 {offsets = [0, 256], sizes = [32, 128], strides = [1, 1]} : vector<32x384xf32> to vector<32x128xf32>
    %c15_i32_30 = arith.constant 15 : i32
    %74 = tpu.dynamic_rotate %73 by %c15_i32_30 dim 0 : vector<32x128xf32>, i32 -> vector<32x128xf32>
    %c31_i32_31 = arith.constant 31 : i32
    %75 = tpu.dynamic_rotate %73 by %c31_i32_31 dim 0 : vector<32x128xf32>, i32 -> vector<32x128xf32>
    %76 = arith.select %20, %74, %75 : vector<32x128xi1>, vector<32x128xf32>
    %77 = arith.addf %72, %76 : vector<32x128xf32>
    %c0_32 = arith.constant 0 : index
    %c0_33 = arith.constant 0 : index
    %78 = vector.load %arg4[%c0_32, %c0_33] : memref<1x128xf32, #tpu.memory_space<vmem>>, vector<1x128xf32>
    %79 = vector.broadcast %78 : vector<1x128xf32> to vector<32x128xf32>
    %80 = arith.addf %77, %79 : vector<32x128xf32>
    %cst_34 = arith.constant dense<0.000000e+00> : vector<128xf32>
    %81 = vector.multi_reduction <add>, %80, %cst_34 [0] : vector<32x128xf32> to vector<128xf32>
    %82 = vector.shape_cast %81 : vector<128xf32> to vector<1x128xf32>
    %c0_35 = arith.constant 0 : index
    %c0_36 = arith.constant 0 : index
    %83 = vector.load %arg6[%c0_35, %c0_36] : memref<128x128xf32, #tpu.memory_space<vmem>>, vector<128x128xf32>
    %cst_37 = arith.constant dense<0.000000e+00> : vector<1x128xf32>
    %84 = tpu.matmul %82, %83, %cst_37 {dimension_numbers = #tpu.dot_dimension_numbers<[1], [0], [0], [1], [0, 0, 1, 1], [], []>} : vector<1x128xf32>, vector<128x128xf32>, vector<1x128xf32> -> vector<1x128xf32>
    %cst_38 = arith.constant 0.001953125 : f32
    %85 = vector.broadcast %cst_38 : f32 to vector<1x128xf32>
    %86 = arith.mulf %84, %85 : vector<1x128xf32>
    %87 = vector.broadcast %86 : vector<1x128xf32> to vector<32x128xf32>
    %88 = arith.subf %80, %87 : vector<32x128xf32>
    %89 = arith.mulf %88, %88 : vector<32x128xf32>
    %cst_39 = arith.constant dense<0.000000e+00> : vector<128xf32>
    %90 = vector.multi_reduction <add>, %89, %cst_39 [0] : vector<32x128xf32> to vector<128xf32>
    %91 = vector.shape_cast %90 : vector<128xf32> to vector<1x128xf32>
    %c0_40 = arith.constant 0 : index
    %c0_41 = arith.constant 0 : index
    %92 = vector.load %arg6[%c0_40, %c0_41] : memref<128x128xf32, #tpu.memory_space<vmem>>, vector<128x128xf32>
    %cst_42 = arith.constant dense<0.000000e+00> : vector<1x128xf32>
    %93 = tpu.matmul %91, %92, %cst_42 {dimension_numbers = #tpu.dot_dimension_numbers<[1], [0], [0], [1], [0, 0, 1, 1], [], []>} : vector<1x128xf32>, vector<128x128xf32>, vector<1x128xf32> -> vector<1x128xf32>
    %cst_43 = arith.constant 0.001953125 : f32
    %94 = vector.broadcast %cst_43 : f32 to vector<1x128xf32>
    %95 = arith.mulf %93, %94 : vector<1x128xf32>
    %cst_44 = arith.constant 9.99999974E-6 : f32
    %96 = vector.broadcast %cst_44 : f32 to vector<1x128xf32>
    %97 = arith.addf %95, %96 : vector<1x128xf32>
    %98 = math.rsqrt %97 : vector<1x128xf32>
    %99 = vector.broadcast %98 : vector<1x128xf32> to vector<32x128xf32>
    %100 = arith.mulf %88, %99 : vector<32x128xf32>
    %101 = arith.addf %41, %100 : vector<32x128xf32>
    %c0_45 = arith.constant 0 : index
    %c0_46 = arith.constant 0 : index
    %102 = vector.load %arg7[%c0_45, %c0_46] : memref<32x128xf32, #tpu.memory_space<vmem>>, vector<32x128xf32>
    tpu.vector_store %arg7[%c0_45, %c0_46], %101 {strides = array<i32>} : memref<32x128xf32, #tpu.memory_space<vmem>>, vector<32x128xf32>,
    return
  }
}

</mosaic_0001>

<llo_original>
// kernel: tile.14
$region0: #{tile.14}
  #allocation0 [shape = 's32[1]{0}', space=sflag, size = 0x4, scoped, tag = 'scoped memory for tile.14']
  %s0 = inlined_call_operand.vmem [shape: f32[8], index: 0, kind: input, shape index: {}]
  %s1 = inlined_call_operand.vmem [shape: f32[16,8], index: 1, kind: output, shape index: {}]
  // Predicated region
  $region2: #{tile.14} parent=0 // pred_check
    _
  $region3: #{tile.14} parent=0 // pred_check_branch
    %3 = sbr.rel (0) target = $region5
  $region4: #{tile.14} parent=0 // pred_region
    _
  $region5: #{tile.14} parent=0 // pred_fallthru
    _
  %v4 = vld [vmem:[%s0] ss:$0 sm:$0xff]
  %5 = vst [vmem:[%s1] sm:$0xff] %v4
  %s6 = scalar_lea.vmem %s1, 8
  %7 = vst [vmem:[%s6] sm:$0xff] %v4

// kernel: tile.15
$region0: #{tile.15}
  %s0 = inlined_call_operand.vmem [shape: f32[16,8], index: 0, kind: input, shape index: {}]
  %s1 = inlined_call_operand.vmem [shape: f32[1,128], index: 1, kind: output, shape index: {}]
  $region1: #{tile.15} parent=0
    #allocation0 [shape = 'u8[4096]{0}', space=vmem, size = 0x1000, scoped, tag = 'scoped mem for output reshape']
    %v2 = vld [vmem:[%s0] sm:$0x1]
    %vm3 = vcmask 64512
    %4 = vst.msk [vmem:[#allocation0] sm:$0x1] %vm3, %v2
    %s5 = scalar_lea.vmem %s0, 15
    %v6 = vld [vmem:[%s5] sm:$0x1]
    %7 = vrot.lane.b32.xlu0 %v6, 120
    %v8 = vpop.permute.xlu0 %7
    %vm9 = vcmask 1048512
    %10 = vst.msk [vmem:[#allocation0] sm:$0x1] %vm9, %v8
    %s11 = scalar_lea.vmem %s0, 14
    %v12 = vld [vmem:[%s11] sm:$0x1]
    %13 = vrot.lane.b32.xlu0 %v12, 112
    %v14 = vpop.permute.xlu0 %13
    %vm15 = vcmask 982912
    %16 = vst.msk [vmem:[#allocation0] sm:$0x1] %vm15, %v14
    %s17 = scalar_lea.vmem %s0, 13
    %v18 = vld [vmem:[%s17] sm:$0x1]
    %19 = vrot.lane.b32.xlu0 %v18, 104
    %v20 = vpop.permute.xlu0 %19
    %vm21 = vcmask 917312
    %22 = vst.msk [vmem:[#allocation0] sm:$0x1] %vm21, %v20
    %s23 = scalar_lea.vmem %s0, 12
    %v24 = vld [vmem:[%s23] sm:$0x1]
    %25 = vrot.lane.b32.xlu0 %v24, 96
    %v26 = vpop.permute.xlu0 %25
    %vm27 = vcmask 851712
    %28 = vst.msk [vmem:[#allocation0] sm:$0x1] %vm27, %v26
    %s29 = scalar_lea.vmem %s0, 11
    %v30 = vld [vmem:[%s29] sm:$0x1]
    %31 = vrot.lane.b32.xlu0 %v30, 88
    %v32 = vpop.permute.xlu0 %31
    %vm33 = vcmask 786112
    %34 = vst.msk [vmem:[#allocation0] sm:$0x1] %vm33, %v32
    %s35 = scalar_lea.vmem %s0, 10
    %v36 = vld [vmem:[%s35] sm:$0x1]
    %37 = vrot.lane.b32.xlu0 %v36, 80
    %v38 = vpop.permute.xlu0 %37
    %vm39 = vcmask 720512
    %40 = vst.msk [vmem:[#allocation0] sm:$0x1] %vm39, %v38
    %s41 = scalar_lea.vmem %s0, 9
    %v42 = vld [vmem:[%s41] sm:$0x1]
    %43 = vrot.lane.b32.xlu0 %v42, 72
    %v44 = vpop.permute.xlu0 %43
    %vm45 = vcmask 654912
    %46 = vst.msk [vmem:[#allocation0] sm:$0x1] %vm45, %v44
    %s47 = scalar_lea.vmem %s0, 8
    %v48 = vld [vmem:[%s47] sm:$0x1]
    %49 = vrot.lane.b32.xlu0 %v48, 64
    %v50 = vpop.permute.xlu0 %49
    %vm51 = vcmask 589312
    %52 = vst.msk [vmem:[#allocation0] sm:$0x1] %vm51, %v50
    %s53 = scalar_lea.vmem %s0, 7
    %v54 = vld [vmem:[%s53] sm:$0x1]
    %55 = vrot.lane.b32.xlu0 %v54, 56
    %v56 = vpop.permute.xlu0 %55
    %vm57 = vcmask 523712
    %58 = vst.msk [vmem:[#allocation0] sm:$0x1] %vm57, %v56
    %s59 = scalar_lea.vmem %s0, 6
    %v60 = vld [vmem:[%s59] sm:$0x1]
    %61 = vrot.lane.b32.xlu0 %v60, 48
    %v62 = vpop.permute.xlu0 %61
    %vm63 = vcmask 458112
    %64 = vst.msk [vmem:[#allocation0] sm:$0x1] %vm63, %v62
    %s65 = scalar_lea.vmem %s0, 5
    %v66 = vld [vmem:[%s65] sm:$0x1]
    %67 = vrot.lane.b32.xlu0 %v66, 40
    %v68 = vpop.permute.xlu0 %67
    %vm69 = vcmask 392512
    %70 = vst.msk [vmem:[#allocation0] sm:$0x1] %vm69, %v68
    %s71 = scalar_lea.vmem %s0, 4
    %v72 = vld [vmem:[%s71] sm:$0x1]
    %73 = vrot.lane.b32.xlu0 %v72, 32
    %v74 = vpop.permute.xlu0 %73
    %vm75 = vcmask 326912
    %76 = vst.msk [vmem:[#allocation0] sm:$0x1] %vm75, %v74
    %s77 = scalar_lea.vmem %s0, 3
    %v78 = vld [vmem:[%s77] sm:$0x1]
    %79 = vrot.lane.b32.xlu0 %v78, 24
    %v80 = vpop.permute.xlu0 %79
    %vm81 = vcmask 261312
    %82 = vst.msk [vmem:[#allocation0] sm:$0x1] %vm81, %v80
    %s83 = scalar_lea.vmem %s0, 2
    %v84 = vld [vmem:[%s83] sm:$0x1]
    %85 = vrot.lane.b32.xlu0 %v84, 16
    %v86 = vpop.permute.xlu0 %85
    %vm87 = vcmask 195712
    %88 = vst.msk [vmem:[#allocation0] sm:$0x1] %vm87, %v86
    %s89 = scalar_lea.vmem %s0, 1
    %v90 = vld [vmem:[%s89] sm:$0x1]
    %91 = vrot.lane.b32.xlu0 %v90, 8
    %v92 = vpop.permute.xlu0 %91
    %vm93 = vcmask 130112
    %94 = vst.msk [vmem:[#allocation0] sm:$0x1] %vm93, %v92
    %s96 = sshllo.u32 0, 1
    %v98 = vld [vmem:[#allocation0] sm:%s96]
    %s99 = sshllo.u32 0, 1
    %100 = vst [vmem:[%s1] sm:%s99] %v98

// kernel: e2_res_block_nchw.1
$region0: #{e2_res_block_nchw.1}
  #allocation0 [shape = 'u32[]', space=smem, size = 0x4, offset = 0x4, fixed_abs, tag = 'smem constant byte address 0x4 - core index']
  #allocation1 [shape = 'u32[144,128]{1,0:T(1,128)}', space=vmem, size = 0x12000, scoped, tag = 'internal scratch']
  %s0 = inlined_call_operand.vmem [shape: bf16[32,64], index: 0, kind: input, shape index: {}]
  %s1 = inlined_call_operand.vmem [shape: bf16[64,512], index: 1, kind: input, shape index: {}]
  %s2 = inlined_call_operand.vmem [shape: f32[1,128], index: 2, kind: input, shape index: {}]
  %s3 = inlined_call_operand.vmem [shape: bf16[128,384], index: 3, kind: input, shape index: {}]
  %s4 = inlined_call_operand.vmem [shape: f32[1,128], index: 4, kind: input, shape index: {}]
  %s5 = inlined_call_operand.vmem [shape: f32[1,128], index: 5, kind: input, shape index: {}]
  %s6 = inlined_call_operand.vmem [shape: f32[128,128], index: 6, kind: input, shape index: {}]
  %s7 = inlined_call_operand.vmem [shape: f32[32,128], index: 7, kind: output, shape index: {}]
  %s8 = sld [smem:[#allocation0]]
  $region38: #{e2_res_block_nchw.1} parent=0
    _
  %s10 = ssub.s32 1, %s8
  %s11 = scalar_select 0, %s10, %s8
  // Predicated region
  $region2: #{e2_res_block_nchw.1} parent=0 // pred_check
    _
  $region3: #{e2_res_block_nchw.1} parent=0 // pred_check_branch
    %13 = sbr.rel (0) target = $region5
  $region4: #{e2_res_block_nchw.1} parent=0 // pred_region
    _
  $region5: #{e2_res_block_nchw.1} parent=0 // pred_fallthru
    _
  // Predicated region
  $region6: #{e2_res_block_nchw.1} parent=0 // pred_check
    _
  $region7: #{e2_res_block_nchw.1} parent=0 // pred_check_branch
    %15 = sbr.rel (0) target = $region9
  $region8: #{e2_res_block_nchw.1} parent=0 // pred_region
    _
  $region9: #{e2_res_block_nchw.1} parent=0 // pred_fallthru
    _
  // Predicated region
  $region10: #{e2_res_block_nchw.1} parent=0 // pred_check
    _
  $region11: #{e2_res_block_nchw.1} parent=0 // pred_check_branch
    %17 = sbr.rel (0) target = $region13
  $region12: #{e2_res_block_nchw.1} parent=0 // pred_region
    _
  $region13: #{e2_res_block_nchw.1} parent=0 // pred_fallthru
    _
  // Predicated region
  $region14: #{e2_res_block_nchw.1} parent=0 // pred_check
    _
  $region15: #{e2_res_block_nchw.1} parent=0 // pred_check_branch
    %19 = sbr.rel (0) target = $region17
  $region16: #{e2_res_block_nchw.1} parent=0 // pred_region
    _
  $region17: #{e2_res_block_nchw.1} parent=0 // pred_fallthru
    _
  // Predicated region
  $region18: #{e2_res_block_nchw.1} parent=0 // pred_check
    _
  $region19: #{e2_res_block_nchw.1} parent=0 // pred_check_branch
    %21 = sbr.rel (0) target = $region21
  $region20: #{e2_res_block_nchw.1} parent=0 // pred_region
    _
  $region21: #{e2_res_block_nchw.1} parent=0 // pred_fallthru
    _
  // Predicated region
  $region22: #{e2_res_block_nchw.1} parent=0 // pred_check
    _
  $region23: #{e2_res_block_nchw.1} parent=0 // pred_check_branch
    %23 = sbr.rel (0) target = $region25
  $region24: #{e2_res_block_nchw.1} parent=0 // pred_region
    _
  $region25: #{e2_res_block_nchw.1} parent=0 // pred_fallthru
    _
  // Predicated region
  $region26: #{e2_res_block_nchw.1} parent=0 // pred_check
    _
  $region27: #{e2_res_block_nchw.1} parent=0 // pred_check_branch
    %25 = sbr.rel (0) target = $region29
  $region28: #{e2_res_block_nchw.1} parent=0 // pred_region
    _
  $region29: #{e2_res_block_nchw.1} parent=0 // pred_fallthru
    _
  %v27 = vlaneseq
  %v28 = vshrl.u32 %v27, 7
  %v29 = vadd.s32 %v28, 8
  %v30 = vadd.s32 %v28, 16
  %v31 = vadd.s32 %v28, 24
  %vm32 = vcmp.lt.s32.totalorder %v28, 0
  %v33 = vsub.s32 0, %v28
  %v34 = vsel %vm32, %v33, %v28
  %v35 = vshrl.u32 %v34, 4
  %v36 = vand.u32 %v34, 15
  %v37 = vsub.s32 0, %v36
  %v38 = vsel %vm32, %v37, %v36
  %vm39 = vcmp.lt.s32.totalorder %v29, 0
  %v40 = vsub.s32 0, %v29
  %v41 = vsel %vm39, %v40, %v29
  %v42 = vshrl.u32 %v41, 4
  %v43 = vand.u32 %v41, 15
  %v44 = vsub.s32 0, %v43
  %v45 = vsel %vm39, %v44, %v43
  %vm46 = vcmp.lt.s32.totalorder %v30, 0
  %v47 = vsub.s32 0, %v30
  %v48 = vsel %vm46, %v47, %v30
  %v49 = vshrl.u32 %v48, 4
  %v50 = vand.u32 %v48, 15
  %v51 = vsub.s32 0, %v50
  %v52 = vsel %vm46, %v51, %v50
  %vm53 = vcmp.lt.s32.totalorder %v31, 0
  %v54 = vsub.s32 0, %v31
  %v55 = vsel %vm53, %v54, %v31
  %v56 = vshrl.u32 %v55, 4
  %v57 = vand.u32 %v55, 15
  %v58 = vsub.s32 0, %v57
  %v59 = vsel %vm53, %v58, %v57
  %vm60 = vcmp.ne.s32.totalorder %v38, 0
  %vm61 = vcmp.ne.s32.totalorder %v45, 0
  %vm62 = vcmp.ne.s32.totalorder %v52, 0
  %vm63 = vcmp.ne.s32.totalorder %v59, 0
  %vm64 = vcmp.lt.s32.totalorder %v38, 0
  %vm65 = vcmp.lt.s32.totalorder %v45, 0
  %vm66 = vcmp.lt.s32.totalorder %v52, 0
  %vm67 = vcmp.lt.s32.totalorder %v59, 0
  %vm68 = vmand %vm64, %vm60
  %vm69 = vmand %vm65, %vm61
  %vm70 = vmand %vm66, %vm62
  %vm71 = vmand %vm67, %vm63
  %v72 = vadd.s32 %v38, 16
  %v73 = vadd.s32 %v45, 16
  %v74 = vadd.s32 %v52, 16
  %v75 = vadd.s32 %v59, 16
  %v76 = vsel %vm68, %v72, %v38
  %v77 = vsel %vm69, %v73, %v45
  %v78 = vsel %vm70, %v74, %v52
  %v79 = vsel %vm71, %v75, %v59
  %vm80 = vcmp.eq.s32.totalorder %v76, 0
  %vm81 = vcmp.eq.s32.totalorder %v77, 0
  %vm82 = vcmp.eq.s32.totalorder %v78, 0
  %vm83 = vcmp.eq.s32.totalorder %v79, 0
  %vm84 = vcmp.eq.s32.totalorder %v76, 15
  %vm85 = vcmp.eq.s32.totalorder %v77, 15
  %vm86 = vcmp.eq.s32.totalorder %v78, 15
  %vm87 = vcmp.eq.s32.totalorder %v79, 15
  %v88 = vld [vmem:[%s0] sm:$0xf]
  %v89 = vld [vmem:[%s0 + $0x4] sm:$0xf]
  %v90 = vld [vmem:[%s0 + $0x8] sm:$0xf]
  %v91 = vld [vmem:[%s0 + $0xc] sm:$0xf]
  %v92 = vld [vmem:[%s1] sm:$0xff]
  %v93 = vld [vmem:[%s1 + $0x8] sm:$0xff]
  %v94 = vld [vmem:[%s1 + $0x10] sm:$0xff]
  %v95 = vld [vmem:[%s1 + $0x18] sm:$0xff]
  %v96 = vld [vmem:[%s1 + $0x20] sm:$0xff]
  %v97 = vld [vmem:[%s1 + $0x28] sm:$0xff]
  %v98 = vld [vmem:[%s1 + $0x30] sm:$0xff]
  %v99 = vld [vmem:[%s1 + $0x38] sm:$0xff]
  %v100 = vld [vmem:[%s1 + $0x40] sm:$0xff]
  %v101 = vld [vmem:[%s1 + $0x48] sm:$0xff]
  %v102 = vld [vmem:[%s1 + $0x50] sm:$0xff]
  %v103 = vld [vmem:[%s1 + $0x58] sm:$0xff]
  %v104 = vld [vmem:[%s1 + $0x60] sm:$0xff]
  %v105 = vld [vmem:[%s1 + $0x68] sm:$0xff]
  %v106 = vld [vmem:[%s1 + $0x70] sm:$0xff]
  %v107 = vld [vmem:[%s1 + $0x78] sm:$0xff]
  %v112 = vunpack.c.l.b16 %v88
  %v113 = vunpack.c.l.b16 %v89
  %v114 = vunpack.c.l.b16 %v90
  %v115 = vunpack.c.l.b16 %v91
  %v116 = vpack.c.b16 %v113, %v112
  %v117 = vpack.c.b16 %v115, %v114
  %v134 = vunpack.c.l.b16 %v92
  %v135 = vunpack.c.h.b16 %v92
  %v136 = vunpack.c.l.b16 %v93
  %v137 = vunpack.c.h.b16 %v93
  %v138 = vunpack.c.l.b16 %v94
  %v139 = vunpack.c.h.b16 %v94
  %v140 = vunpack.c.l.b16 %v95
  %v141 = vunpack.c.h.b16 %v95
  %v142 = vunpack.c.l.b16 %v96
  %v143 = vunpack.c.h.b16 %v96
  %v144 = vunpack.c.l.b16 %v97
  %v145 = vunpack.c.h.b16 %v97
  %v146 = vunpack.c.l.b16 %v98
  %v147 = vunpack.c.h.b16 %v98
  %v148 = vunpack.c.l.b16 %v99
  %v149 = vunpack.c.h.b16 %v99
  %v150 = vunpack.c.l.b16 %v100
  %v151 = vunpack.c.h.b16 %v100
  %v152 = vunpack.c.l.b16 %v101
  %v153 = vunpack.c.h.b16 %v101
  %v154 = vunpack.c.l.b16 %v102
  %v155 = vunpack.c.h.b16 %v102
  %v156 = vunpack.c.l.b16 %v103
  %v157 = vunpack.c.h.b16 %v103
  %v158 = vunpack.c.l.b16 %v104
  %v159 = vunpack.c.h.b16 %v104
  %v160 = vunpack.c.l.b16 %v105
  %v161 = vunpack.c.h.b16 %v105
  %v162 = vunpack.c.l.b16 %v106
  %v163 = vunpack.c.h.b16 %v106
  %v164 = vunpack.c.l.b16 %v107
  %v165 = vunpack.c.h.b16 %v107
  %v166 = vpack.c.b16 %v138, %v134
  %v167 = vpack.c.b16 %v139, %v135
  %v168 = vpack.c.b16 %v140, %v136
  %v169 = vpack.c.b16 %v141, %v137
  %v170 = vpack.c.b16 %v146, %v142
  %v171 = vpack.c.b16 %v147, %v143
  %v172 = vpack.c.b16 %v148, %v144
  %v173 = vpack.c.b16 %v149, %v145
  %v174 = vpack.c.b16 %v154, %v150
  %v175 = vpack.c.b16 %v155, %v151
  %v176 = vpack.c.b16 %v156, %v152
  %v177 = vpack.c.b16 %v157, %v153
  %v178 = vpack.c.b16 %v162, %v158
  %v179 = vpack.c.b16 %v163, %v159
  %v180 = vpack.c.b16 %v164, %v160
  %v181 = vpack.c.b16 %v165, %v161
  %vm198 = vcmask 523264
  %v200 = vsel %vm198, %v116, 0
  %v203 = vsel %vm198, %v117, 0
  %205 = vmatprep.subr.bf16.mxu0 %v167
  %206 = vmatpush1.bf16.msra.mxu0 %v166
  %207 = vmatprep.subr.bf16.mxu0 %v171
  %208 = vmatpush1.bf16.msra.mxu0 %v170
  %209 = vmatprep.subr.bf16.mxu0 %v175
  %210 = vmatpush1.bf16.msra.mxu0 %v174
  %211 = vmatprep.subr.bf16.mxu0 %v179
  %212 = vmatpush1.bf16.msra.mxu0 %v178
  %213 = vmatprep.subr.bf16.mxu0 0
  %214 = vmatpush1.bf16.msra.mxu0 0
  %215 = vmatprep.subr.bf16.mxu0 0
  %216 = vmatpush1.bf16.msra.mxu0 0
  %217 = vmatprep.subr.bf16.mxu0 0
  %218 = vmatpush1.bf16.msra.mxu0 0
  %219 = vmatprep.subr.bf16.mxu0 0
  %220 = vmatpush1.bf16.msra.mxu0 0
  %221 = vmatprep.subr.bf16.mxu0 0
  %222 = vmatpush1.bf16.msra.mxu0 0
  %223 = vmatprep.subr.bf16.mxu0 0
  %224 = vmatpush1.bf16.msra.mxu0 0
  %225 = vmatprep.subr.bf16.mxu0 0
  %226 = vmatpush1.bf16.msra.mxu0 0
  %227 = vmatprep.subr.bf16.mxu0 0
  %228 = vmatpush1.bf16.msra.mxu0 0
  %229 = vmatprep.subr.bf16.mxu0 0
  %230 = vmatpush1.bf16.msra.mxu0 0
  %231 = vmatprep.subr.bf16.mxu0 0
  %232 = vmatpush1.bf16.msra.mxu0 0
  %233 = vmatprep.subr.bf16.mxu0 0
  %234 = vmatpush1.bf16.msra.mxu0 0
  %235 = vmatprep.subr.bf16.mxu0 0
  %236 = vmatpush1.bf16.msra.mxu0 0
  %237 = vmatprep.mubr.bf16.mxu0 0
  %238 = vmatmul.mubr.bf16.gmra.mrb[0].mxu0 %v200
  %v239 = vpop.f32.mrb[0].mxu0
  %v240 = vadd.f32 0.0, %v239
  %v241 = vpop.f32.mrb[0].mxu0
  %v242 = vadd.f32 0.0, %v241
  %v243 = vpop.f32.mrb[0].mxu0
  %v244 = vadd.f32 0.0, %v243
  %v245 = vpop.f32.mrb[0].mxu0
  %v246 = vadd.f32 0.0, %v245
  %247 = vmatprep.mubr.bf16.mxu0 0
  %248 = vmatmul.mubr.bf16.gmra.mrb[0].mxu0 %v203
  %v249 = vpop.f32.mrb[0].mxu0
  %v250 = vadd.f32 0.0, %v249
  %v251 = vpop.f32.mrb[0].mxu0
  %v252 = vadd.f32 0.0, %v251
  %v253 = vpop.f32.mrb[0].mxu0
  %v254 = vadd.f32 0.0, %v253
  %v255 = vpop.f32.mrb[0].mxu0
  %v256 = vadd.f32 0.0, %v255
  %257 = vdwg.mxu0
  %258 = vmatprep.subr.bf16.mxu0 %v169
  %259 = vmatpush1.bf16.msra.mxu0 %v168
  %260 = vmatprep.subr.bf16.mxu0 %v173
  %261 = vmatpush1.bf16.msra.mxu0 %v172
  %262 = vmatprep.subr.bf16.mxu0 %v177
  %263 = vmatpush1.bf16.msra.mxu0 %v176
  %264 = vmatprep.subr.bf16.mxu0 %v181
  %265 = vmatpush1.bf16.msra.mxu0 %v180
  %266 = vmatprep.subr.bf16.mxu0 0
  %267 = vmatpush1.bf16.msra.mxu0 0
  %268 = vmatprep.subr.bf16.mxu0 0
  %269 = vmatpush1.bf16.msra.mxu0 0
  %270 = vmatprep.subr.bf16.mxu0 0
  %271 = vmatpush1.bf16.msra.mxu0 0
  %272 = vmatprep.subr.bf16.mxu0 0
  %273 = vmatpush1.bf16.msra.mxu0 0
  %274 = vmatprep.subr.bf16.mxu0 0
  %275 = vmatpush1.bf16.msra.mxu0 0
  %276 = vmatprep.subr.bf16.mxu0 0
  %277 = vmatpush1.bf16.msra.mxu0 0
  %278 = vmatprep.subr.bf16.mxu0 0
  %279 = vmatpush1.bf16.msra.mxu0 0
  %280 = vmatprep.subr.bf16.mxu0 0
  %281 = vmatpush1.bf16.msra.mxu0 0
  %282 = vmatprep.subr.bf16.mxu0 0
  %283 = vmatpush1.bf16.msra.mxu0 0
  %284 = vmatprep.subr.bf16.mxu0 0
  %285 = vmatpush1.bf16.msra.mxu0 0
  %286 = vmatprep.subr.bf16.mxu0 0
  %287 = vmatpush1.bf16.msra.mxu0 0
  %288 = vmatprep.subr.bf16.mxu0 0
  %289 = vmatpush1.bf16.msra.mxu0 0
  %290 = vmatprep.mubr.bf16.mxu0 0
  %291 = vmatmul.mubr.bf16.gmra.mrb[0].mxu0 %v200
  %v292 = vpop.f32.mrb[0].mxu0
  %v293 = vadd.f32 0.0, %v292
  %v294 = vpop.f32.mrb[0].mxu0
  %v295 = vadd.f32 0.0, %v294
  %v296 = vpop.f32.mrb[0].mxu0
  %v297 = vadd.f32 0.0, %v296
  %v298 = vpop.f32.mrb[0].mxu0
  %v299 = vadd.f32 0.0, %v298
  %300 = vmatprep.mubr.bf16.mxu0 0
  %301 = vmatmul.mubr.bf16.gmra.mrb[0].mxu0 %v203
  %v302 = vpop.f32.mrb[0].mxu0
  %v303 = vadd.f32 0.0, %v302
  %v304 = vpop.f32.mrb[0].mxu0
  %v305 = vadd.f32 0.0, %v304
  %v306 = vpop.f32.mrb[0].mxu0
  %v307 = vadd.f32 0.0, %v306
  %v308 = vpop.f32.mrb[0].mxu0
  %v309 = vadd.f32 0.0, %v308
  %310 = vdwg.mxu0
  %v311 = vrot.slane %v240, 7
  %v312 = vrot.slane %v244, 7
  %v313 = vrot.slane %v250, 7
  %v314 = vrot.slane %v254, 7
  %vm315 = vcmp.lt.s32.totalorder %v28, 1
  %v316 = vsel %vm315, %v313, %v314
  %v317 = vsel %vm315, %v312, %v313
  %v318 = vsel %vm315, %v311, %v312
  %v319 = vsel %vm315, %v314, %v311
  %v320 = vsel %vm80, %v317, %v319
  %v321 = vsel %vm81, %v316, %v318
  %v322 = vsel %vm82, %v319, %v317
  %v323 = vsel %vm83, %v318, %v316
  %v324 = vadd.f32 %v320, %v242
  %v325 = vadd.f32 %v321, %v246
  %v326 = vadd.f32 %v322, %v252
  %v327 = vadd.f32 %v323, %v256
  %v328 = vrot.slane %v293, 1
  %v329 = vrot.slane %v297, 1
  %v330 = vrot.slane %v303, 1
  %v331 = vrot.slane %v307, 1
  %vm332 = vcmp.lt.s32.totalorder %v28, 7
  %v333 = vsel %vm332, %v330, %v331
  %v334 = vsel %vm332, %v329, %v330
  %v335 = vsel %vm332, %v328, %v329
  %v336 = vsel %vm332, %v331, %v328
  %v337 = vsel %vm84, %v333, %v335
  %v338 = vsel %vm85, %v336, %v334
  %v339 = vsel %vm86, %v335, %v333
  %v340 = vsel %vm87, %v334, %v336
  %v341 = vadd.f32 %v324, %v337
  %v342 = vadd.f32 %v325, %v338
  %v343 = vadd.f32 %v326, %v339
  %v344 = vadd.f32 %v327, %v340
  %v345 = vld [vmem:[%s2] sm:$0x1]
  %v347 = vlaneseq
  %v348 = vshrl.u32 %v347, 7
  %v349 = vsub.s32 0, %v348
  %v350 = vrot.slane %v345, %v349
  %v352 = vadd.f32 %v341, %v350
  %v353 = vadd.f32 %v342, %v350
  %v354 = vadd.f32 %v343, %v350
  %v355 = vadd.f32 %v344, %v350
  %v356 = vld [vmem:[%s5] sm:$0x1]
  %v358 = vlaneseq
  %v359 = vshrl.u32 %v358, 7
  %v360 = vsub.s32 0, %v359
  %v361 = vrot.slane %v356, %v360
  %v363 = vadd.f32 %v295, %v361
  %v364 = vadd.f32 %v299, %v361
  %v365 = vadd.f32 %v305, %v361
  %v366 = vadd.f32 %v309, %v361
  %v367 = vadd.f32 %v352, %v353
  %v368 = vadd.f32 %v367, %v354
  %v369 = vadd.f32 %v368, %v355
  %v370 = vrot.slane %v369, 4
  %v371 = vadd.f32 %v369, %v370
  %v372 = vrot.slane %v371, 2
  %v373 = vadd.f32 %v371, %v372
  %v374 = vrot.slane %v373, 1
  %v375 = vadd.f32 %v373, %v374
  %v376 = vld [vmem:[%s6] sm:$0xff]
  %v377 = vld [vmem:[%s6 + $0x8] sm:$0xff]
  %v378 = vld [vmem:[%s6 + $0x10] sm:$0xff]
  %v379 = vld [vmem:[%s6 + $0x18] sm:$0xff]
  %v380 = vld [vmem:[%s6 + $0x20] sm:$0xff]
  %v381 = vld [vmem:[%s6 + $0x28] sm:$0xff]
  %v382 = vld [vmem:[%s6 + $0x30] sm:$0xff]
  %v383 = vld [vmem:[%s6 + $0x38] sm:$0xff]
  %v384 = vld [vmem:[%s6 + $0x40] sm:$0xff]
  %v385 = vld [vmem:[%s6 + $0x48] sm:$0xff]
  %v386 = vld [vmem:[%s6 + $0x50] sm:$0xff]
  %v387 = vld [vmem:[%s6 + $0x58] sm:$0xff]
  %v388 = vld [vmem:[%s6 + $0x60] sm:$0xff]
  %v389 = vld [vmem:[%s6 + $0x68] sm:$0xff]
  %v390 = vld [vmem:[%s6 + $0x70] sm:$0xff]
  %v391 = vld [vmem:[%s6 + $0x78] sm:$0xff]
  %392 = vmatprep.subr.mxu0 0.0
  %393 = vmatpush1.msra.mxu0 %v376
  %394 = vmatprep.subr.mxu0 0.0
  %395 = vmatpush1.msra.mxu0 %v377
  %396 = vmatprep.subr.mxu0 0.0
  %397 = vmatpush1.msra.mxu0 %v378
  %398 = vmatprep.subr.mxu0 0.0
  %399 = vmatpush1.msra.mxu0 %v379
  %400 = vmatprep.subr.mxu0 0.0
  %401 = vmatpush1.msra.mxu0 %v380
  %402 = vmatprep.subr.mxu0 0.0
  %403 = vmatpush1.msra.mxu0 %v381
  %404 = vmatprep.subr.mxu0 0.0
  %405 = vmatpush1.msra.mxu0 %v382
  %406 = vmatprep.subr.mxu0 0.0
  %407 = vmatpush1.msra.mxu0 %v383
  %408 = vmatprep.subr.mxu0 0.0
  %409 = vmatpush1.msra.mxu0 %v384
  %410 = vmatprep.subr.mxu0 0.0
  %411 = vmatpush1.msra.mxu0 %v385
  %412 = vmatprep.subr.mxu0 0.0
  %413 = vmatpush1.msra.mxu0 %v386
  %414 = vmatprep.subr.mxu0 0.0
  %415 = vmatpush1.msra.mxu0 %v387
  %416 = vmatprep.subr.mxu0 0.0
  %417 = vmatpush1.msra.mxu0 %v388
  %418 = vmatprep.subr.mxu0 0.0
  %419 = vmatpush1.msra.mxu0 %v389
  %420 = vmatprep.subr.mxu0 0.0
  %421 = vmatpush1.msra.mxu0 %v390
  %422 = vmatprep.subr.mxu0 0.0
  %423 = vmatpush1.msra.mxu0 %v391
  %424 = vmatprep.subr.mxu0 0.0
  %425 = vmatpush1.msra.mxu0 0.0
  %426 = vmatprep.subr.mxu0 0.0
  %427 = vmatpush1.msra.mxu0 0.0
  %428 = vmatprep.subr.mxu0 0.0
  %429 = vmatpush1.msra.mxu0 0.0
  %430 = vmatprep.subr.mxu0 0.0
  %431 = vmatpush1.msra.mxu0 0.0
  %432 = vmatprep.subr.mxu0 0.0
  %433 = vmatpush1.msra.mxu0 0.0
  %434 = vmatprep.subr.mxu0 0.0
  %435 = vmatpush1.msra.mxu0 0.0
  %436 = vmatprep.subr.mxu0 0.0
  %437 = vmatpush1.msra.mxu0 0.0
  %438 = vmatprep.subr.mxu0 0.0
  %439 = vmatpush1.msra.mxu0 0.0
  %440 = vmatprep.subr.mxu0 0.0
  %441 = vmatpush1.msra.mxu0 0.0
  %442 = vmatprep.subr.mxu0 0.0
  %443 = vmatpush1.msra.mxu0 0.0
  %444 = vmatprep.subr.mxu0 0.0
  %445 = vmatpush1.msra.mxu0 0.0
  %446 = vmatprep.subr.mxu0 0.0
  %447 = vmatpush1.msra.mxu0 0.0
  %448 = vmatprep.subr.mxu0 0.0
  %449 = vmatpush1.msra.mxu0 0.0
  %450 = vmatprep.subr.mxu0 0.0
  %451 = vmatpush1.msra.mxu0 0.0
  %452 = vmatprep.subr.mxu0 0.0
  %453 = vmatpush1.msra.mxu0 0.0
  %454 = vmatprep.subr.mxu0 0.0
  %455 = vmatpush1.msra.mxu0 0.0
  %456 = vmatprep.mubr.f32.mxu0 0.0
  %457 = vmatmul.mubr.f32.gmra.mrb[0].mxu0 %v375
  %v458 = vpop.f32.mrb[0].mxu0
  %v459 = vadd.f32 0.0, %v458
  %v460 = vpop.f32.mrb[0].mxu0
  %461 = vdwg.mxu0
  %v462 = vmul.f32 %v459, 0.001953125
  %v463 = vlaneseq
  %v464 = vshrl.u32 %v463, 7
  %v465 = vsub.s32 0, %v464
  %v466 = vrot.slane %v462, %v465
  %v467 = vsub.f32 %v352, %v466
  %v468 = vsub.f32 %v353, %v466
  %v469 = vsub.f32 %v354, %v466
  %v470 = vsub.f32 %v355, %v466
  %v471 = vmul.f32 %v467, %v467
  %v472 = vmul.f32 %v468, %v468
  %v473 = vmul.f32 %v469, %v469
  %v474 = vmul.f32 %v470, %v470
  %v475 = vadd.f32 %v471, %v472
  %v476 = vadd.f32 %v475, %v473
  %v477 = vadd.f32 %v476, %v474
  %v478 = vrot.slane %v477, 4
  %v479 = vadd.f32 %v477, %v478
  %v480 = vrot.slane %v479, 2
  %v481 = vadd.f32 %v479, %v480
  %v482 = vrot.slane %v481, 1
  %v483 = vadd.f32 %v481, %v482
  %484 = vmatprep.subr.mxu0 0.0
  %485 = vmatpush1.msra.mxu0 %v376
  %486 = vmatprep.subr.mxu0 0.0
  %487 = vmatpush1.msra.mxu0 %v377
  %488 = vmatprep.subr.mxu0 0.0
  %489 = vmatpush1.msra.mxu0 %v378
  %490 = vmatprep.subr.mxu0 0.0
  %491 = vmatpush1.msra.mxu0 %v379
  %492 = vmatprep.subr.mxu0 0.0
  %493 = vmatpush1.msra.mxu0 %v380
  %494 = vmatprep.subr.mxu0 0.0
  %495 = vmatpush1.msra.mxu0 %v381
  %496 = vmatprep.subr.mxu0 0.0
  %497 = vmatpush1.msra.mxu0 %v382
  %498 = vmatprep.subr.mxu0 0.0
  %499 = vmatpush1.msra.mxu0 %v383
  %500 = vmatprep.subr.mxu0 0.0
  %501 = vmatpush1.msra.mxu0 %v384
  %502 = vmatprep.subr.mxu0 0.0
  %503 = vmatpush1.msra.mxu0 %v385
  %504 = vmatprep.subr.mxu0 0.0
  %505 = vmatpush1.msra.mxu0 %v386
  %506 = vmatprep.subr.mxu0 0.0
  %507 = vmatpush1.msra.mxu0 %v387
  %508 = vmatprep.subr.mxu0 0.0
  %509 = vmatpush1.msra.mxu0 %v388
  %510 = vmatprep.subr.mxu0 0.0
  %511 = vmatpush1.msra.mxu0 %v389
  %512 = vmatprep.subr.mxu0 0.0
  %513 = vmatpush1.msra.mxu0 %v390
  %514 = vmatprep.subr.mxu0 0.0
  %515 = vmatpush1.msra.mxu0 %v391
  %516 = vmatprep.subr.mxu0 0.0
  %517 = vmatpush1.msra.mxu0 0.0
  %518 = vmatprep.subr.mxu0 0.0
  %519 = vmatpush1.msra.mxu0 0.0
  %520 = vmatprep.subr.mxu0 0.0
  %521 = vmatpush1.msra.mxu0 0.0
  %522 = vmatprep.subr.mxu0 0.0
  %523 = vmatpush1.msra.mxu0 0.0
  %524 = vmatprep.subr.mxu0 0.0
  %525 = vmatpush1.msra.mxu0 0.0
  %526 = vmatprep.subr.mxu0 0.0
  %527 = vmatpush1.msra.mxu0 0.0
  %528 = vmatprep.subr.mxu0 0.0
  %529 = vmatpush1.msra.mxu0 0.0
  %530 = vmatprep.subr.mxu0 0.0
  %531 = vmatpush1.msra.mxu0 0.0
  %532 = vmatprep.subr.mxu0 0.0
  %533 = vmatpush1.msra.mxu0 0.0
  %534 = vmatprep.subr.mxu0 0.0
  %535 = vmatpush1.msra.mxu0 0.0
  %536 = vmatprep.subr.mxu0 0.0
  %537 = vmatpush1.msra.mxu0 0.0
  %538 = vmatprep.subr.mxu0 0.0
  %539 = vmatpush1.msra.mxu0 0.0
  %540 = vmatprep.subr.mxu0 0.0
  %541 = vmatpush1.msra.mxu0 0.0
  %542 = vmatprep.subr.mxu0 0.0
  %543 = vmatpush1.msra.mxu0 0.0
  %544 = vmatprep.subr.mxu0 0.0
  %545 = vmatpush1.msra.mxu0 0.0
  %546 = vmatprep.subr.mxu0 0.0
  %547 = vmatpush1.msra.mxu0 0.0
  %548 = vmatprep.mubr.f32.mxu0 0.0
  %549 = vmatmul.mubr.f32.gmra.mrb[0].mxu0 %v483
  %v550 = vpop.f32.mrb[0].mxu0
  %v551 = vadd.f32 0.0, %v550
  %v552 = vpop.f32.mrb[0].mxu0
  %553 = vdwg.mxu0
  %v554 = vmul.f32 %v551, 0.001953125
  %v555 = vadd.f32 %v554, 1e-05
  %v556 = vrsqrt.pop %v555
  %v557 = vlaneseq
  %v558 = vshrl.u32 %v557, 7
  %v559 = vsub.s32 0, %v558
  %v560 = vrot.slane %v556, %v559
  %v561 = vmul.f32 %v467, %v560
  %v562 = vmul.f32 %v468, %v560
  %v563 = vmul.f32 %v469, %v560
  %v564 = vmul.f32 %v470, %v560
  %v565 = vmax.f32 %v561, 0.0
  %v566 = vmax.f32 %v562, 0.0
  %v567 = vmax.f32 %v563, 0.0
  %v568 = vmax.f32 %v564, 0.0
  %v569 = vpack.c.bf16 %v566, %v565
  %v570 = vpack.c.bf16 %v568, %v567
  %v571 = vld [vmem:[%s3] sm:$0xff]
  %v572 = vld [vmem:[%s3 + $0x8] sm:$0xf]
  %v573 = vld [vmem:[%s3 + $0xc] sm:$0xff]
  %v574 = vld [vmem:[%s3 + $0x14] sm:$0xf]
  %v575 = vld [vmem:[%s3 + $0x18] sm:$0xff]
  %v576 = vld [vmem:[%s3 + $0x20] sm:$0xf]
  %v577 = vld [vmem:[%s3 + $0x24] sm:$0xff]
  %v578 = vld [vmem:[%s3 + $0x2c] sm:$0xf]
  %v579 = vld [vmem:[%s3 + $0x30] sm:$0xff]
  %v580 = vld [vmem:[%s3 + $0x38] sm:$0xf]
  %v581 = vld [vmem:[%s3 + $0x3c] sm:$0xff]
  %v582 = vld [vmem:[%s3 + $0x44] sm:$0xf]
  %v583 = vld [vmem:[%s3 + $0x48] sm:$0xff]
  %v584 = vld [vmem:[%s3 + $0x50] sm:$0xf]
  %v585 = vld [vmem:[%s3 + $0x54] sm:$0xff]
  %v586 = vld [vmem:[%s3 + $0x5c] sm:$0xf]
  %v587 = vld [vmem:[%s3 + $0x60] sm:$0xff]
  %v588 = vld [vmem:[%s3 + $0x68] sm:$0xf]
  %v589 = vld [vmem:[%s3 + $0x6c] sm:$0xff]
  %v590 = vld [vmem:[%s3 + $0x74] sm:$0xf]
  %v591 = vld [vmem:[%s3 + $0x78] sm:$0xff]
  %v592 = vld [vmem:[%s3 + $0x80] sm:$0xf]
  %v593 = vld [vmem:[%s3 + $0x84] sm:$0xff]
  %v594 = vld [vmem:[%s3 + $0x8c] sm:$0xf]
  %v595 = vld [vmem:[%s3 + $0x90] sm:$0xff]
  %v596 = vld [vmem:[%s3 + $0x98] sm:$0xf]
  %v597 = vld [vmem:[%s3 + $0x9c] sm:$0xff]
  %v598 = vld [vmem:[%s3 + $0xa4] sm:$0xf]
  %v599 = vld [vmem:[%s3 + $0xa8] sm:$0xff]
  %v600 = vld [vmem:[%s3 + $0xb0] sm:$0xf]
  %v601 = vld [vmem:[%s3 + $0xb4] sm:$0xff]
  %v602 = vld [vmem:[%s3 + $0xbc] sm:$0xf]
  %v635 = vunpack.c.l.b16 %v571
  %v636 = vunpack.c.h.b16 %v571
  %v637 = vunpack.c.l.b16 %v572
  %v638 = vunpack.c.l.b16 %v573
  %v639 = vunpack.c.h.b16 %v573
  %v640 = vunpack.c.l.b16 %v574
  %v641 = vunpack.c.l.b16 %v575
  %v642 = vunpack.c.h.b16 %v575
  %v643 = vunpack.c.l.b16 %v576
  %v644 = vunpack.c.l.b16 %v577
  %v645 = vunpack.c.h.b16 %v577
  %v646 = vunpack.c.l.b16 %v578
  %v647 = vunpack.c.l.b16 %v579
  %v648 = vunpack.c.h.b16 %v579
  %v649 = vunpack.c.l.b16 %v580
  %v650 = vunpack.c.l.b16 %v581
  %v651 = vunpack.c.h.b16 %v581
  %v652 = vunpack.c.l.b16 %v582
  %v653 = vunpack.c.l.b16 %v583
  %v654 = vunpack.c.h.b16 %v583
  %v655 = vunpack.c.l.b16 %v584
  %v656 = vunpack.c.l.b16 %v585
  %v657 = vunpack.c.h.b16 %v585
  %v658 = vunpack.c.l.b16 %v586
  %v659 = vunpack.c.l.b16 %v587
  %v660 = vunpack.c.h.b16 %v587
  %v661 = vunpack.c.l.b16 %v588
  %v662 = vunpack.c.l.b16 %v589
  %v663 = vunpack.c.h.b16 %v589
  %v664 = vunpack.c.l.b16 %v590
  %v665 = vunpack.c.l.b16 %v591
  %v666 = vunpack.c.h.b16 %v591
  %v667 = vunpack.c.l.b16 %v592
  %v668 = vunpack.c.l.b16 %v593
  %v669 = vunpack.c.h.b16 %v593
  %v670 = vunpack.c.l.b16 %v594
  %v671 = vunpack.c.l.b16 %v595
  %v672 = vunpack.c.h.b16 %v595
  %v673 = vunpack.c.l.b16 %v596
  %v674 = vunpack.c.l.b16 %v597
  %v675 = vunpack.c.h.b16 %v597
  %v676 = vunpack.c.l.b16 %v598
  %v677 = vunpack.c.l.b16 %v599
  %v678 = vunpack.c.h.b16 %v599
  %v679 = vunpack.c.l.b16 %v600
  %v680 = vunpack.c.l.b16 %v601
  %v681 = vunpack.c.h.b16 %v601
  %v682 = vunpack.c.l.b16 %v602
  %v683 = vpack.c.b16 %v638, %v635
  %v684 = vpack.c.b16 %v639, %v636
  %v685 = vpack.c.b16 %v640, %v637
  %v686 = vpack.c.b16 %v644, %v641
  %v687 = vpack.c.b16 %v645, %v642
  %v688 = vpack.c.b16 %v646, %v643
  %v689 = vpack.c.b16 %v650, %v647
  %v690 = vpack.c.b16 %v651, %v648
  %v691 = vpack.c.b16 %v652, %v649
  %v692 = vpack.c.b16 %v656, %v653
  %v693 = vpack.c.b16 %v657, %v654
  %v694 = vpack.c.b16 %v658, %v655
  %v695 = vpack.c.b16 %v662, %v659
  %v696 = vpack.c.b16 %v663, %v660
  %v697 = vpack.c.b16 %v664, %v661
  %v698 = vpack.c.b16 %v668, %v665
  %v699 = vpack.c.b16 %v669, %v666
  %v700 = vpack.c.b16 %v670, %v667
  %v701 = vpack.c.b16 %v674, %v671
  %v702 = vpack.c.b16 %v675, %v672
  %v703 = vpack.c.b16 %v676, %v673
  %v704 = vpack.c.b16 %v680, %v677
  %v705 = vpack.c.b16 %v681, %v678
  %v706 = vpack.c.b16 %v682, %v679
  %731 = vmatprep.subr.bf16.mxu0 %v684
  %732 = vmatpush1.bf16.msra.mxu0 %v683
  %733 = vmatprep.subr.bf16.mxu0 %v687
  %734 = vmatpush1.bf16.msra.mxu0 %v686
  %735 = vmatprep.subr.bf16.mxu0 %v690
  %736 = vmatpush1.bf16.msra.mxu0 %v689
  %737 = vmatprep.subr.bf16.mxu0 %v693
  %738 = vmatpush1.bf16.msra.mxu0 %v692
  %739 = vmatprep.subr.bf16.mxu0 %v696
  %740 = vmatpush1.bf16.msra.mxu0 %v695
  %741 = vmatprep.subr.bf16.mxu0 %v699
  %742 = vmatpush1.bf16.msra.mxu0 %v698
  %743 = vmatprep.subr.bf16.mxu0 %v702
  %744 = vmatpush1.bf16.msra.mxu0 %v701
  %745 = vmatprep.subr.bf16.mxu0 %v705
  %746 = vmatpush1.bf16.msra.mxu0 %v704
  %747 = vmatprep.subr.bf16.mxu0 0
  %748 = vmatpush1.bf16.msra.mxu0 0
  %749 = vmatprep.subr.bf16.mxu0 0
  %750 = vmatpush1.bf16.msra.mxu0 0
  %751 = vmatprep.subr.bf16.mxu0 0
  %752 = vmatpush1.bf16.msra.mxu0 0
  %753 = vmatprep.subr.bf16.mxu0 0
  %754 = vmatpush1.bf16.msra.mxu0 0
  %755 = vmatprep.subr.bf16.mxu0 0
  %756 = vmatpush1.bf16.msra.mxu0 0
  %757 = vmatprep.subr.bf16.mxu0 0
  %758 = vmatpush1.bf16.msra.mxu0 0
  %759 = vmatprep.subr.bf16.mxu0 0
  %760 = vmatpush1.bf16.msra.mxu0 0
  %761 = vmatprep.subr.bf16.mxu0 0
  %762 = vmatpush1.bf16.msra.mxu0 0
  %763 = vmatprep.mubr.bf16.mxu0 0
  %764 = vmatmul.mubr.bf16.gmra.mrb[0].mxu0 %v569
  %v765 = vpop.f32.mrb[0].mxu0
  %v766 = vadd.f32 0.0, %v765
  %v767 = vpop.f32.mrb[0].mxu0
  %v768 = vadd.f32 0.0, %v767
  %v769 = vpop.f32.mrb[0].mxu0
  %v770 = vadd.f32 0.0, %v769
  %v771 = vpop.f32.mrb[0].mxu0
  %v772 = vadd.f32 0.0, %v771
  %773 = vmatprep.mubr.bf16.mxu0 0
  %774 = vmatmul.mubr.bf16.gmra.mrb[0].mxu0 %v570
  %v775 = vpop.f32.mrb[0].mxu0
  %v776 = vadd.f32 0.0, %v775
  %v777 = vpop.f32.mrb[0].mxu0
  %v778 = vadd.f32 0.0, %v777
  %v779 = vpop.f32.mrb[0].mxu0
  %v780 = vadd.f32 0.0, %v779
  %v781 = vpop.f32.mrb[0].mxu0
  %v782 = vadd.f32 0.0, %v781
  %783 = vdwg.mxu0
  %784 = vmatprep.subr.bf16.mxu0 0
  %785 = vmatpush1.bf16.msra.mxu0 %v685
  %786 = vmatprep.subr.bf16.mxu0 0
  %787 = vmatpush1.bf16.msra.mxu0 %v688
  %788 = vmatprep.subr.bf16.mxu0 0
  %789 = vmatpush1.bf16.msra.mxu0 %v691
  %790 = vmatprep.subr.bf16.mxu0 0
  %791 = vmatpush1.bf16.msra.mxu0 %v694
  %792 = vmatprep.subr.bf16.mxu0 0
  %793 = vmatpush1.bf16.msra.mxu0 %v697
  %794 = vmatprep.subr.bf16.mxu0 0
  %795 = vmatpush1.bf16.msra.mxu0 %v700
  %796 = vmatprep.subr.bf16.mxu0 0
  %797 = vmatpush1.bf16.msra.mxu0 %v703
  %798 = vmatprep.subr.bf16.mxu0 0
  %799 = vmatpush1.bf16.msra.mxu0 %v706
  %800 = vmatprep.subr.bf16.mxu0 0
  %801 = vmatpush1.bf16.msra.mxu0 0
  %802 = vmatprep.subr.bf16.mxu0 0
  %803 = vmatpush1.bf16.msra.mxu0 0
  %804 = vmatprep.subr.bf16.mxu0 0
  %805 = vmatpush1.bf16.msra.mxu0 0
  %806 = vmatprep.subr.bf16.mxu0 0
  %807 = vmatpush1.bf16.msra.mxu0 0
  %808 = vmatprep.subr.bf16.mxu0 0
  %809 = vmatpush1.bf16.msra.mxu0 0
  %810 = vmatprep.subr.bf16.mxu0 0
  %811 = vmatpush1.bf16.msra.mxu0 0
  %812 = vmatprep.subr.bf16.mxu0 0
  %813 = vmatpush1.bf16.msra.mxu0 0
  %814 = vmatprep.subr.bf16.mxu0 0
  %815 = vmatpush1.bf16.msra.mxu0 0
  %816 = vmatprep.mubr.bf16.mxu0 0
  %817 = vmatmul.mubr.bf16.gmra.mrb[0].mxu0 %v569
  %v818 = vpop.f32.mrb[0].mxu0
  %v819 = vadd.f32 0.0, %v818
  %v820 = vpop.f32.mrb[0].mxu0
  %v821 = vpop.f32.mrb[0].mxu0
  %v822 = vadd.f32 0.0, %v821
  %v823 = vpop.f32.mrb[0].mxu0
  %824 = vmatprep.mubr.bf16.mxu0 0
  %825 = vmatmul.mubr.bf16.gmra.mrb[0].mxu0 %v570
  %v826 = vpop.f32.mrb[0].mxu0
  %v827 = vadd.f32 0.0, %v826
  %v828 = vpop.f32.mrb[0].mxu0
  %v829 = vpop.f32.mrb[0].mxu0
  %v830 = vadd.f32 0.0, %v829
  %v831 = vpop.f32.mrb[0].mxu0
  %832 = vdwg.mxu0
  %v833 = vrot.slane %v766, 7
  %v834 = vrot.slane %v770, 7
  %v835 = vrot.slane %v776, 7
  %v836 = vrot.slane %v780, 7
  %v837 = vsel %vm315, %v835, %v836
  %v838 = vsel %vm315, %v834, %v835
  %v839 = vsel %vm315, %v833, %v834
  %v840 = vsel %vm315, %v836, %v833
  %v841 = vsel %vm80, %v838, %v840
  %v842 = vsel %vm81, %v837, %v839
  %v843 = vsel %vm82, %v840, %v838
  %v844 = vsel %vm83, %v839, %v837
  %v845 = vadd.f32 %v841, %v768
  %v846 = vadd.f32 %v842, %v772
  %v847 = vadd.f32 %v843, %v778
  %v848 = vadd.f32 %v844, %v782
  %v849 = vrot.slane %v819, 1
  %v850 = vrot.slane %v822, 1
  %v851 = vrot.slane %v827, 1
  %v852 = vrot.slane %v830, 1
  %v853 = vsel %vm332, %v851, %v852
  %v854 = vsel %vm332, %v850, %v851
  %v855 = vsel %vm332, %v849, %v850
  %v856 = vsel %vm332, %v852, %v849
  %v857 = vsel %vm84, %v853, %v855
  %v858 = vsel %vm85, %v856, %v854
  %v859 = vsel %vm86, %v855, %v853
  %v860 = vsel %vm87, %v854, %v856
  %v861 = vadd.f32 %v845, %v857
  %v862 = vadd.f32 %v846, %v858
  %v863 = vadd.f32 %v847, %v859
  %v864 = vadd.f32 %v848, %v860
  %v865 = vld [vmem:[%s4] sm:$0x1]
  %v867 = vlaneseq
  %v868 = vshrl.u32 %v867, 7
  %v869 = vsub.s32 0, %v868
  %v870 = vrot.slane %v865, %v869
  %v872 = vadd.f32 %v861, %v870
  %v873 = vadd.f32 %v862, %v870
  %v874 = vadd.f32 %v863, %v870
  %v875 = vadd.f32 %v864, %v870
  %v876 = vadd.f32 %v872, %v873
  %v877 = vadd.f32 %v876, %v874
  %v878 = vadd.f32 %v877, %v875
  %v879 = vrot.slane %v878, 4
  %v880 = vadd.f32 %v878, %v879
  %v881 = vrot.slane %v880, 2
  %v882 = vadd.f32 %v880, %v881
  %v883 = vrot.slane %v882, 1
  %v884 = vadd.f32 %v882, %v883
  %885 = vmatprep.subr.mxu0 0.0
  %886 = vmatpush1.msra.mxu0 %v376
  %887 = vmatprep.subr.mxu0 0.0
  %888 = vmatpush1.msra.mxu0 %v377
  %889 = vmatprep.subr.mxu0 0.0
  %890 = vmatpush1.msra.mxu0 %v378
  %891 = vmatprep.subr.mxu0 0.0
  %892 = vmatpush1.msra.mxu0 %v379
  %893 = vmatprep.subr.mxu0 0.0
  %894 = vmatpush1.msra.mxu0 %v380
  %895 = vmatprep.subr.mxu0 0.0
  %896 = vmatpush1.msra.mxu0 %v381
  %897 = vmatprep.subr.mxu0 0.0
  %898 = vmatpush1.msra.mxu0 %v382
  %899 = vmatprep.subr.mxu0 0.0
  %900 = vmatpush1.msra.mxu0 %v383
  %901 = vmatprep.subr.mxu0 0.0
  %902 = vmatpush1.msra.mxu0 %v384
  %903 = vmatprep.subr.mxu0 0.0
  %904 = vmatpush1.msra.mxu0 %v385
  %905 = vmatprep.subr.mxu0 0.0
  %906 = vmatpush1.msra.mxu0 %v386
  %907 = vmatprep.subr.mxu0 0.0
  %908 = vmatpush1.msra.mxu0 %v387
  %909 = vmatprep.subr.mxu0 0.0
  %910 = vmatpush1.msra.mxu0 %v388
  %911 = vmatprep.subr.mxu0 0.0
  %912 = vmatpush1.msra.mxu0 %v389
  %913 = vmatprep.subr.mxu0 0.0
  %914 = vmatpush1.msra.mxu0 %v390
  %915 = vmatprep.subr.mxu0 0.0
  %916 = vmatpush1.msra.mxu0 %v391
  %917 = vmatprep.subr.mxu0 0.0
  %918 = vmatpush1.msra.mxu0 0.0
  %919 = vmatprep.subr.mxu0 0.0
  %920 = vmatpush1.msra.mxu0 0.0
  %921 = vmatprep.subr.mxu0 0.0
  %922 = vmatpush1.msra.mxu0 0.0
  %923 = vmatprep.subr.mxu0 0.0
  %924 = vmatpush1.msra.mxu0 0.0
  %925 = vmatprep.subr.mxu0 0.0
  %926 = vmatpush1.msra.mxu0 0.0
  %927 = vmatprep.subr.mxu0 0.0
  %928 = vmatpush1.msra.mxu0 0.0
  %929 = vmatprep.subr.mxu0 0.0
  %930 = vmatpush1.msra.mxu0 0.0
  %931 = vmatprep.subr.mxu0 0.0
  %932 = vmatpush1.msra.mxu0 0.0
  %933 = vmatprep.subr.mxu0 0.0
  %934 = vmatpush1.msra.mxu0 0.0
  %935 = vmatprep.subr.mxu0 0.0
  %936 = vmatpush1.msra.mxu0 0.0
  %937 = vmatprep.subr.mxu0 0.0
  %938 = vmatpush1.msra.mxu0 0.0
  %939 = vmatprep.subr.mxu0 0.0
  %940 = vmatpush1.msra.mxu0 0.0
  %941 = vmatprep.subr.mxu0 0.0
  %942 = vmatpush1.msra.mxu0 0.0
  %943 = vmatprep.subr.mxu0 0.0
  %944 = vmatpush1.msra.mxu0 0.0
  %945 = vmatprep.subr.mxu0 0.0
  %946 = vmatpush1.msra.mxu0 0.0
  %947 = vmatprep.subr.mxu0 0.0
  %948 = vmatpush1.msra.mxu0 0.0
  %949 = vmatprep.mubr.f32.mxu0 0.0
  %950 = vmatmul.mubr.f32.gmra.mrb[0].mxu0 %v884
  %v951 = vpop.f32.mrb[0].mxu0
  %v952 = vadd.f32 0.0, %v951
  %v953 = vpop.f32.mrb[0].mxu0
  %954 = vdwg.mxu0
  %v955 = vmul.f32 %v952, 0.001953125
  %v956 = vlaneseq
  %v957 = vshrl.u32 %v956, 7
  %v958 = vsub.s32 0, %v957
  %v959 = vrot.slane %v955, %v958
  %v960 = vsub.f32 %v872, %v959
  %v961 = vsub.f32 %v873, %v959
  %v962 = vsub.f32 %v874, %v959
  %v963 = vsub.f32 %v875, %v959
  %v964 = vmul.f32 %v960, %v960
  %v965 = vmul.f32 %v961, %v961
  %v966 = vmul.f32 %v962, %v962
  %v967 = vmul.f32 %v963, %v963
  %v968 = vadd.f32 %v964, %v965
  %v969 = vadd.f32 %v968, %v966
  %v970 = vadd.f32 %v969, %v967
  %v971 = vrot.slane %v970, 4
  %v972 = vadd.f32 %v970, %v971
  %v973 = vrot.slane %v972, 2
  %v974 = vadd.f32 %v972, %v973
  %v975 = vrot.slane %v974, 1
  %v976 = vadd.f32 %v974, %v975
  %977 = vmatprep.subr.mxu0 0.0
  %978 = vmatpush1.msra.mxu0 %v376
  %979 = vmatprep.subr.mxu0 0.0
  %980 = vmatpush1.msra.mxu0 %v377
  %981 = vmatprep.subr.mxu0 0.0
  %982 = vmatpush1.msra.mxu0 %v378
  %983 = vmatprep.subr.mxu0 0.0
  %984 = vmatpush1.msra.mxu0 %v379
  %985 = vmatprep.subr.mxu0 0.0
  %986 = vmatpush1.msra.mxu0 %v380
  %987 = vmatprep.subr.mxu0 0.0
  %988 = vmatpush1.msra.mxu0 %v381
  %989 = vmatprep.subr.mxu0 0.0
  %990 = vmatpush1.msra.mxu0 %v382
  %991 = vmatprep.subr.mxu0 0.0
  %992 = vmatpush1.msra.mxu0 %v383
  %993 = vmatprep.subr.mxu0 0.0
  %994 = vmatpush1.msra.mxu0 %v384
  %995 = vmatprep.subr.mxu0 0.0
  %996 = vmatpush1.msra.mxu0 %v385
  %997 = vmatprep.subr.mxu0 0.0
  %998 = vmatpush1.msra.mxu0 %v386
  %999 = vmatprep.subr.mxu0 0.0
  %1000 = vmatpush1.msra.mxu0 %v387
  %1001 = vmatprep.subr.mxu0 0.0
  %1002 = vmatpush1.msra.mxu0 %v388
  %1003 = vmatprep.subr.mxu0 0.0
  %1004 = vmatpush1.msra.mxu0 %v389
  %1005 = vmatprep.subr.mxu0 0.0
  %1006 = vmatpush1.msra.mxu0 %v390
  %1007 = vmatprep.subr.mxu0 0.0
  %1008 = vmatpush1.msra.mxu0 %v391
  %1009 = vmatprep.subr.mxu0 0.0
  %1010 = vmatpush1.msra.mxu0 0.0
  %1011 = vmatprep.subr.mxu0 0.0
  %1012 = vmatpush1.msra.mxu0 0.0
  %1013 = vmatprep.subr.mxu0 0.0
  %1014 = vmatpush1.msra.mxu0 0.0
  %1015 = vmatprep.subr.mxu0 0.0
  %1016 = vmatpush1.msra.mxu0 0.0
  %1017 = vmatprep.subr.mxu0 0.0
  %1018 = vmatpush1.msra.mxu0 0.0
  %1019 = vmatprep.subr.mxu0 0.0
  %1020 = vmatpush1.msra.mxu0 0.0
  %1021 = vmatprep.subr.mxu0 0.0
  %1022 = vmatpush1.msra.mxu0 0.0
  %1023 = vmatprep.subr.mxu0 0.0
  %1024 = vmatpush1.msra.mxu0 0.0
  %1025 = vmatprep.subr.mxu0 0.0
  %1026 = vmatpush1.msra.mxu0 0.0
  %1027 = vmatprep.subr.mxu0 0.0
  %1028 = vmatpush1.msra.mxu0 0.0
  %1029 = vmatprep.subr.mxu0 0.0
  %1030 = vmatpush1.msra.mxu0 0.0
  %1031 = vmatprep.subr.mxu0 0.0
  %1032 = vmatpush1.msra.mxu0 0.0
  %1033 = vmatprep.subr.mxu0 0.0
  %1034 = vmatpush1.msra.mxu0 0.0
  %1035 = vmatprep.subr.mxu0 0.0
  %1036 = vmatpush1.msra.mxu0 0.0
  %1037 = vmatprep.subr.mxu0 0.0
  %1038 = vmatpush1.msra.mxu0 0.0
  %1039 = vmatprep.subr.mxu0 0.0
  %1040 = vmatpush1.msra.mxu0 0.0
  %1041 = vmatprep.mubr.f32.mxu0 0.0
  %1042 = vmatmul.mubr.f32.gmra.mrb[0].mxu0 %v976
  %v1043 = vpop.f32.mrb[0].mxu0
  %v1044 = vadd.f32 0.0, %v1043
  %v1045 = vpop.f32.mrb[0].mxu0
  %1046 = vdwg.mxu0
  %v1047 = vmul.f32 %v1044, 0.001953125
  %v1048 = vadd.f32 %v1047, 1e-05
  %v1049 = vrsqrt.pop %v1048
  %v1050 = vlaneseq
  %v1051 = vshrl.u32 %v1050, 7
  %v1052 = vsub.s32 0, %v1051
  %v1053 = vrot.slane %v1049, %v1052
  %v1054 = vmul.f32 %v960, %v1053
  %v1055 = vmul.f32 %v961, %v1053
  %v1056 = vmul.f32 %v962, %v1053
  %v1057 = vmul.f32 %v963, %v1053
  %v1058 = vadd.f32 %v363, %v1054
  %v1059 = vadd.f32 %v364, %v1055
  %v1060 = vadd.f32 %v365, %v1056
  %v1061 = vadd.f32 %v366, %v1057
  %1062 = vst [vmem:[%s7] sm:$0xff] %v1058
  %1063 = vst [vmem:[%s7 + $0x8] sm:$0xff] %v1059
  %1064 = vst [vmem:[%s7 + $0x10] sm:$0xff] %v1060
  %1065 = vst [vmem:[%s7 + $0x18] sm:$0xff] %v1061
  // Predicated region
  $region30: #{e2_res_block_nchw.1} parent=0 // pred_check
    _
  $region31: #{e2_res_block_nchw.1} parent=0 // pred_check_branch
    %1067 = sbr.rel (0) target = $region33
  $region32: #{e2_res_block_nchw.1} parent=0 // pred_region
    _
  $region33: #{e2_res_block_nchw.1} parent=0 // pred_fallthru
    _
  // Predicated region
  $region34: #{e2_res_block_nchw.1} parent=0 // pred_check
    _
  $region35: #{e2_res_block_nchw.1} parent=0 // pred_check_branch
    %1069 = sbr.rel (0) target = $region37
  $region36: #{e2_res_block_nchw.1} parent=0 // pred_region
    _
  $region37: #{e2_res_block_nchw.1} parent=0 // pred_fallthru
    _

</llo_original>
